<compile_context>
chip_gen: v7x
topology: tpu7x:2x2x1
jax: 0.10.0
libtpu: 0.0.40
codegen_flags: <defaults>
</compile_context>

<pallas_src>
import jax
import jax.numpy as jnp
from jax.experimental import pallas as pl
from jax.experimental.pallas import tpu as pltpu


LANES = 512              # lane-dense slab width (multiple of 128)
FAST_PATH_ELEMS = 8192   # below this, plain XLA elementwise wins


def _round_up(a: int, b: int) -> int:
    return ((a + b - 1) // b) * b


def _tile_rows_for_device() -> int:
    # v6e / v7x: 4 MiB tiles (2048 rows x 512 lanes x 4 B) -> ~16 MiB live
    #            with in+out double-buffering, well under 32 MiB scoped VMEM.
    # v5e / unknown: 2 MiB tiles (8 MiB live) -- bigger buys ~nothing at
    #            ~820 GB/s and this stays safe under every scoped default.
    try:
        kind = jax.devices()[0].device_kind.lower()
    except Exception:
        kind = ""
    if ("v6" in kind) or ("v7" in kind) or ("7x" in kind):
        return 2048
    return 1024


def affine_kernel(w_ref, b_ref, x_ref, o_ref):
    # w_ref, b_ref: (1,) f32 scalars in SMEM (broadcast implicitly on the VPU)
    # x_ref, o_ref: (tile_rows, LANES) f32 tiles in VMEM
    o_ref[...] = x_ref[...] * w_ref[0] + b_ref[0]


def linear_forward(x, weight, bias):
    """x: (N, 1) f32, weight: (1, 1) f32, bias: (1,) f32 -> (N, 1) f32."""
    orig_shape = x.shape
    n = x.size
    dtype = x.dtype

    w = weight.reshape(()).astype(dtype)
    b = bias.reshape(()).astype(dtype)

    # ---- tiny-batch fast path: one fused XLA elementwise pass --------------
    if n < FAST_PATH_ELEMS:
        return x * w + b

    # ---- lane-dense re-layout: pad only to a multiple of LANES -------------
    lanes = LANES
    rows = -(-n // lanes)                      # ceil(n / lanes)
    flat = x.reshape(-1)
    padded = rows * lanes
    if padded != n:
        flat = jnp.pad(flat, (0, padded - n))
    x2d = flat.reshape(rows, lanes)

    # ---- tile sizing: >=2 grid steps so "parallel" shards across v7x TCs ---
    tile_rows = _tile_rows_for_device()
    if rows >= 16:
        tile_rows = min(tile_rows, _round_up(-(-rows // 2), 8))
    else:
        tile_rows = min(tile_rows, _round_up(rows, 8))
    grid = (pl.cdiv(rows, tile_rows),)         # ragged last block is masked

    w_s = w.reshape(1)                         # SMEM scalar
    b_s = b.reshape(1)                         # SMEM scalar

    itemsize = jnp.dtype(dtype).itemsize
    cost = pl.CostEstimate(
        flops=2 * n,
        transcendentals=0,
        bytes_accessed=2 * padded * itemsize,  # one read + one write of slab
    )

    y2d = pl.pallas_call(
        affine_kernel,
        out_shape=jax.ShapeDtypeStruct((rows, lanes), dtype),
        grid=grid,
        in_specs=[
            pl.BlockSpec(memory_space=pltpu.MemorySpace.SMEM),   # weight
            pl.BlockSpec(memory_space=pltpu.MemorySpace.SMEM),   # bias
            pl.BlockSpec((tile_rows, lanes), lambda i: (i, 0)),  # x tile
        ],
        out_specs=pl.BlockSpec((tile_rows, lanes), lambda i: (i, 0)),
        compiler_params=pltpu.CompilerParams(
            dimension_semantics=("parallel",),
            allow_input_fusion=[False, False, True],  # fuse pad/reshape into input DMA
            vmem_limit_bytes=32 << 20,
        ),
        cost_estimate=cost,
    )(w_s, b_s, x2d)

    # ---- undo padding, restore (N, 1) layout (module contract) -------------
    return y2d.reshape(-1)[:n].reshape(orig_shape)


if __name__ == "__main__":
    key = jax.random.PRNGKey(0)
    kx, kw, kb = jax.random.split(key, 3)

    # torch.nn.Linear(1, 1)-style init: uniform(-1, 1) (bound = 1/sqrt(1)).
    weight = jax.random.uniform(kw, (1, 1), jnp.float32, minval=-1.0, maxval=1.0)
    bias = jax.random.uniform(kb, (1,), jnp.float32, minval=-1.0, maxval=1.0)

    # 1) Small batch (8, 1) -- same layout as the module; exercises fast path.
    x_small = jax.random.normal(kx, (8, 1), jnp.float32)
    y_small = linear_forward(x_small, weight, bias)
    jax.block_until_ready(y_small)
    ref_small = x_small @ weight.T + bias
    assert y_small.shape == (8, 1)
    assert jnp.allclose(y_small, ref_small, atol=1e-6), "mismatch (fast path)"

    # 2) Ragged batch -> Pallas path with pad-to-LANES and ragged last block.
    x_rag = jax.random.normal(kx, (100_000, 1), jnp.float32)
    y_rag = linear_forward(x_rag, weight, bias)
    jax.block_until_ready(y_rag)
    ref_rag = x_rag @ weight.T + bias
    assert y_rag.shape == (100_000, 1)
    assert jnp.allclose(y_rag, ref_rag, atol=1e-6), "mismatch (ragged Pallas)"

    # 3) Exact multiple of LANES -> Pallas path with zero padding.
    x_even = jax.random.normal(kx, (131_072, 1), jnp.float32)
    y_even = linear_forward(x_even, weight, bias)
    jax.block_until_ready(y_even)
    ref_even = x_even @ weight.T + bias
    assert y_even.shape == (131_072, 1)
    assert jnp.allclose(y_even, ref_even, atol=1e-6), "mismatch (even Pallas)"

    print("KERNEL_OK")
</pallas_src>

<mosaic_0001>
module attributes {stable_mosaic.version = 11 : i64} {
  func.func @affine_kernel(%arg0: i32, %arg1: memref<1xf32, #tpu.memory_space<smem>>, %arg2: memref<1xf32, #tpu.memory_space<smem>>, %arg3: memref<104x512xf32, #tpu.memory_space<vmem>>, %arg4: memref<104x512xf32, #tpu.memory_space<vmem>>) attributes {dimension_semantics = [#tpu.dimension_semantics<parallel>], iteration_bounds = array<i64: 2>, scalar_prefetch = 0 : i64, scratch_operands = 0 : i64, tpu.core_type = #tpu.core_type<tc>, window_params = [{transform_indices = @transform_0, window_bounds = array<i64: 1>}, {transform_indices = @transform_1, window_bounds = array<i64: 1>}, {transform_indices = @transform_2, window_bounds = array<i64: 104, 512>}, {transform_indices = @transform_3, window_bounds = array<i64: 104, 512>}]} {
    %c0 = arith.constant 0 : index
    %c0_0 = arith.constant 0 : index
    %0 = vector.load %arg3[%c0, %c0_0] : memref<104x512xf32, #tpu.memory_space<vmem>>, vector<104x512xf32>
    %c0_1 = arith.constant 0 : index
    %1 = memref.load %arg1[%c0_1] : memref<1xf32, #tpu.memory_space<smem>>
    %2 = vector.broadcast %1 : f32 to vector<104x512xf32>
    %3 = arith.mulf %0, %2 : vector<104x512xf32>
    %c0_2 = arith.constant 0 : index
    %4 = memref.load %arg2[%c0_2] : memref<1xf32, #tpu.memory_space<smem>>
    %5 = vector.broadcast %4 : f32 to vector<104x512xf32>
    %6 = arith.addf %3, %5 : vector<104x512xf32>
    %c0_3 = arith.constant 0 : index
    %c0_4 = arith.constant 0 : index
    %7 = vector.load %arg4[%c0_3, %c0_4] : memref<104x512xf32, #tpu.memory_space<vmem>>, vector<104x512xf32>
    tpu.vector_store %arg4[%c0_3, %c0_4], %6 {strides = array<i32>} : memref<104x512xf32, #tpu.memory_space<vmem>>, vector<104x512xf32>,
    return
  }
  func.func @transform_0(%arg0: i32) -> i32 {
    %c0_i32 = arith.constant 0 : i32
    %c0_i32_0 = arith.constant 0 : i32
    return %c0_i32 : i32
  }
  func.func @transform_1(%arg0: i32) -> i32 {
    %c0_i32 = arith.constant 0 : i32
    %c0_i32_0 = arith.constant 0 : i32
    return %c0_i32 : i32
  }
  func.func @transform_2(%arg0: i32) -> (i32, i32) {
    %c0_i32 = arith.constant 0 : i32
    %c0_i32_0 = arith.constant 0 : i32
    return %arg0, %c0_i32 : i32, i32
  }
  func.func @transform_3(%arg0: i32) -> (i32, i32) {
    %c0_i32 = arith.constant 0 : i32
    %c0_i32_0 = arith.constant 0 : i32
    return %arg0, %c0_i32 : i32, i32
  }
}

</mosaic_0001>

<llo_original>
// kernel: tpu_custom_call.1
$region0: #{tpu_custom_call.1}
  #allocation0 [shape = 'u32[]', space=smem, size = 0x4, offset = 0x4, fixed_abs, tag = 'smem constant byte address 0x4 - core index']
  #allocation1 [shape = 'u32[144,128]{1,0:T(1,128)}', space=vmem, size = 0x12000, scoped, tag = 'internal scratch']
  #allocation2 [shape = 'f32[1]{0:T(128)S(6)}', space=smem, size = 0x200, scoped, tag = 'scoped memory for tpu_custom_call.1']
  #allocation3 [shape = 'f32[1]{0:T(128)S(6)}', space=smem, size = 0x200, scoped, tag = 'scoped memory for tpu_custom_call.1']
  %s0 = inlined_call_operand.<no memory space> [shape: f32[1], index: 0, kind: input, shape index: {}]
  %s1 = inlined_call_operand.<no memory space> [shape: f32[1], index: 1, kind: input, shape index: {}]
  %s2 = inlined_call_operand.hbm [shape: f32[196,512], index: 2, kind: input, shape index: {}]
  %s3 = inlined_call_operand.hbm [shape: f32[196,512], index: 3, kind: output, shape index: {}]
  %s4 = sld [smem:[#allocation0]]
  $region49: #{tpu_custom_call.1} parent=0
    _
  %s6 = ssub.s32 1, %s4
  %s7 = scalar_select 0, %s6, %s4
  %8 = sst [smem:[#allocation2]] %s0
  %9 = sst [smem:[#allocation3]] %s1
  $region1: #{tpu_custom_call.1} parent=0
    #allocation4 [shape = 'u8[425984]{0}', space=vmem, size = 0x68000, scoped, tag = 'input window, operand 2']
    #allocation5 [shape = 's32[2]{0}', space=sflag, size = 0x8, scoped, tag = 'scoped memory for tpu_custom_call.1']
    #allocation6 [shape = 's32[2]{0}', space=sflag, size = 0x8, scoped, tag = 'scoped memory for tpu_custom_call.1']
    #allocation7 [shape = 'u8[425984]{0}', space=vmem, size = 0x68000, scoped, tag = 'output window, operand 0']
    %10 = vsyncpa [#allocation5], 0
    %s11 = scalar_lea.sflag [#allocation5], 1
    %12 = vsyncpa %s11, 0
    %13 = vsyncpa [#allocation6], 0
    %s14 = scalar_lea.sflag [#allocation6], 1
    %15 = vsyncpa %s14, 0
    loop: start=0, step=1, limit=4
    $region2: #{tpu_custom_call.1} parent=1 // loop_pre_header
      _
    $region3: #{tpu_custom_call.1} parent=1 // loop_header
      %s17 = sphi 0, %s21
      %p18 = scmp.ge.s32.totalorder %s17, 4
      %s25 = sphi 0, %s25
      %s27 = sphi 0, %s25
      %s28 = sphi 0, %s27
      %s42 = sphi 0, %s28
      %s46 = sphi 0, %s46
      %s48 = sphi 0, %s46
      %s49 = sphi 0, %s48
      %s63 = sphi 0, %s49
      %s69 = sphi 0, %s71
      %s72 = sphi 0, %s69
      %s73 = sphi 0, %s72
      %s89 = sphi 0, %s73
      %s95 = sphi 0, %s97
      %s98 = sphi 0, %s95
      %s99 = sphi 0, %s98
      %s115 = sphi 0, %s99
    $region4: #{tpu_custom_call.1} parent=1 // loop_header_branch
      %20 = sbr.rel (%p18) target = $region8
    $region5: #{tpu_custom_call.1} parent=1 // loop_body
      %s22 = ssub.s32 %s17, 1
      %s23 = ssub.s32 %s17, 2
      %s24 = sadd.s32 %s17, 1
      %s26 = sadd.s32 %s25, 1
      %p29 = scmp.eq.s32.totalorder %s17, 1
      %p30 = scmp.ne.s32.totalorder %s25, %s27
      %p31 = scmp.eq.s32.totalorder %s17, 0
      %p32 = por %p30, %p31
      %p33 = scmp.ne.s32.totalorder %s25, %s27
      %p34 = scmp.eq.s32.totalorder %s22, 1
      %p35 = por %p33, %p34
      %p36 = scmp.ne.s32.totalorder %s27, %s28
      %p37 = scmp.eq.s32.totalorder %s22, 0
      %p38 = por %p36, %p37
      %p39 = scmp.ne.s32.totalorder %s27, %s28
      %p40 = scmp.eq.s32.totalorder %s23, 1
      %p41 = por %p39, %p40
      %p43 = scmp.ne.s32.totalorder %s28, %s42
      %p44 = scmp.eq.s32.totalorder %s23, 0
      %p45 = por %p43, %p44
      %s47 = sadd.s32 %s46, 1
      %p50 = scmp.eq.s32.totalorder %s17, 1
      %p51 = scmp.ne.s32.totalorder %s46, %s48
      %p52 = scmp.eq.s32.totalorder %s17, 0
      %p53 = por %p51, %p52
      %p54 = scmp.ne.s32.totalorder %s46, %s48
      %p55 = scmp.eq.s32.totalorder %s22, 1
      %p56 = por %p54, %p55
      %p57 = scmp.ne.s32.totalorder %s48, %s49
      %p58 = scmp.eq.s32.totalorder %s22, 0
      %p59 = por %p57, %p58
      %p60 = scmp.ne.s32.totalorder %s48, %s49
      %p61 = scmp.eq.s32.totalorder %s23, 1
      %p62 = por %p60, %p61
      %p64 = scmp.ne.s32.totalorder %s49, %s63
      %p65 = scmp.eq.s32.totalorder %s23, 0
      %p66 = por %p64, %p65
      %s67 = ssub.s32 %s17, %s24
      %p68 = scmp.eq.s32.totalorder %s67, 0
      %s70 = sadd.s32 %s69, 1
      %s71 = scalar_select %p68, %s69, %s70
      %p74 = pneg %p68
      %p75 = scmp.eq.s32.totalorder %s17, 1
      %p76 = por %p74, %p75
      %p77 = scmp.ne.s32.totalorder %s69, %s72
      %p78 = scmp.eq.s32.totalorder %s17, 0
      %p79 = por %p77, %p78
      %p80 = scmp.ne.s32.totalorder %s69, %s72
      %p81 = scmp.eq.s32.totalorder %s22, 1
      %p82 = por %p80, %p81
      %p83 = scmp.ne.s32.totalorder %s72, %s73
      %p84 = scmp.eq.s32.totalorder %s22, 0
      %p85 = por %p83, %p84
      %p86 = scmp.ne.s32.totalorder %s72, %s73
      %p87 = scmp.eq.s32.totalorder %s23, 1
      %p88 = por %p86, %p87
      %p90 = scmp.ne.s32.totalorder %s73, %s89
      %p91 = scmp.eq.s32.totalorder %s23, 0
      %p92 = por %p90, %p91
      %s93 = ssub.s32 %s17, %s24
      %p94 = scmp.eq.s32.totalorder %s93, 0
      %s96 = sadd.s32 %s95, 1
      %s97 = scalar_select %p94, %s95, %s96
      %p100 = pneg %p94
      %p101 = scmp.eq.s32.totalorder %s17, 1
      %p102 = por %p100, %p101
      %p103 = scmp.ne.s32.totalorder %s95, %s98
      %p104 = scmp.eq.s32.totalorder %s17, 0
      %p105 = por %p103, %p104
      %p106 = scmp.ne.s32.totalorder %s95, %s98
      %p107 = scmp.eq.s32.totalorder %s22, 1
      %p108 = por %p106, %p107
      %p109 = scmp.ne.s32.totalorder %s98, %s99
      %p110 = scmp.eq.s32.totalorder %s22, 0
      %p111 = por %p109, %p110
      %p112 = scmp.ne.s32.totalorder %s98, %s99
      %p113 = scmp.eq.s32.totalorder %s23, 1
      %p114 = por %p112, %p113
      %p116 = scmp.ne.s32.totalorder %s99, %s115
      %p117 = scmp.eq.s32.totalorder %s23, 0
      %p118 = por %p116, %p117
      %p119 = scmp.le.s32.totalorder 1, %s17
      %p120 = scmp.lt.s32.totalorder %s17, 3
      %p121 = pnand %p119, %p120
      %p122 = pneg %p121
      // Predicated region
      $region9: #{tpu_custom_call.1} parent=5 // pred_check
        _
      $region10: #{tpu_custom_call.1} parent=5 // pred_check_branch
        %124 = sbr.rel (%p121) target = $region12
      $region11: #{tpu_custom_call.1} parent=5 // pred_region
        %s125 = ssub.s32 %s17, 1
        // Predicated region
        $region13: #{tpu_custom_call.1} parent=11 // pred_check
          %p126 = pneg %p38
        $region14: #{tpu_custom_call.1} parent=11 // pred_check_branch
          %128 = sbr.rel (%p126) target = $region16
        $region15: #{tpu_custom_call.1} parent=11 // pred_region
          _
        $region16: #{tpu_custom_call.1} parent=11 // pred_fallthru
          _
        // Predicated region
        $region17: #{tpu_custom_call.1} parent=11 // pred_check
          %p129 = pneg %p59
        $region18: #{tpu_custom_call.1} parent=11 // pred_check_branch
          %131 = sbr.rel (%p129) target = $region20
        $region19: #{tpu_custom_call.1} parent=11 // pred_region
          _
        $region20: #{tpu_custom_call.1} parent=11 // pred_fallthru
          _
      $region12: #{tpu_custom_call.1} parent=5 // pred_fallthru
        _
      %p132 = scmp.lt.s32.totalorder %s17, 2
      // Predicated region
      $region21: #{tpu_custom_call.1} parent=5 // pred_check
        %p133 = pneg %p132
      $region22: #{tpu_custom_call.1} parent=5 // pred_check_branch
        %135 = sbr.rel (%p133) target = $region24
      $region23: #{tpu_custom_call.1} parent=5 // pred_region
        // Predicated region
        $region25: #{tpu_custom_call.1} parent=23 // pred_check
          %p136 = pneg %p79
        $region26: #{tpu_custom_call.1} parent=23 // pred_check_branch
          %138 = sbr.rel (%p136) target = $region28
        $region27: #{tpu_custom_call.1} parent=23 // pred_region
          %s139 = sand.u32 %s69, 1
          %s140 = scalar_lea.sflag [#allocation5], %s139
          %s141 = sand.u32 %s69, 1
          %s142 = smul.addr %s141, 416
          %s143 = scalar_lea.vmem [#allocation4], %s142
          %s144 = smul.u32 13, %s17
          %s145 = ssub.s32 25, %s144
          %p146 = scmp.lt.s32.totalorder %s145, 13
          %s147 = scalar_select %p146, %s145, 13
          %s148 = smul.u32 128, %s147
          %s149 = smul.u32 %s148, 4
          %s151 = ssub.s32 6656, %s149
          %152 = vsyncadd %s140, %s151
          %p153 = scmp.ne.s32.totalorder 0, %s149
          %s154 = smul.addr %s144, 4
          %s155 = smul.addr %s154, 128
          %s156 = scalar_lea.hbm %s2, %s155
          %s157 = smul.u32 32, %s147
          %s158 = sshll.u32 %s143, 4
          %s159 = int_to_ptr.vmem [resolvable:$true] %s158
          %s160 = sshll.u32 %s157, 4
          %164 = dma.hbm_to_vmem [thread:$0]  (%p153), %s156, %s160, %s159, %s140, 512, 512, 32
        $region28: #{tpu_custom_call.1} parent=23 // pred_fallthru
          _
      $region24: #{tpu_custom_call.1} parent=5 // pred_fallthru
        _
      %p165 = scmp.le.s32.totalorder 1, %s17
      %p166 = scmp.lt.s32.totalorder %s17, 3
      %p167 = pnand %p165, %p166
      %p168 = pneg %p167
      // Predicated region
      $region29: #{tpu_custom_call.1} parent=5 // pred_check
        _
      $region30: #{tpu_custom_call.1} parent=5 // pred_check_branch
        %170 = sbr.rel (%p167) target = $region32
      $region31: #{tpu_custom_call.1} parent=5 // pred_region
        %s171 = ssub.s32 %s17, 1
        %s172 = sand.u32 %s72, 1
        %s173 = scalar_lea.sflag [#allocation5], %s172
        %s174 = sand.u32 %s72, 1
        %s175 = smul.addr %s174, 416
        %s176 = scalar_lea.vmem [#allocation4], %s175
        // Predicated region
        $region33: #{tpu_custom_call.1} parent=31 // pred_check
          %p177 = pneg %p85
        $region34: #{tpu_custom_call.1} parent=31 // pred_check_branch
          %179 = sbr.rel (%p177) target = $region36
        $region35: #{tpu_custom_call.1} parent=31 // pred_region
          %180 = dma.done %s173, 6656
        $region36: #{tpu_custom_call.1} parent=31 // pred_fallthru
          _
        %p181 = pneg %p38
        %p182 = pneg %p35
        %p183 = pneg %p59
        %p184 = pneg %p56
        %s185 = sand.u32 %s72, 1
        %s186 = scalar_lea.sflag [#allocation5], %s185
        %s187 = sand.u32 %s72, 1
        %s188 = smul.addr %s187, 416
        %s189 = scalar_lea.vmem [#allocation4], %s188
        %p190 = pneg %p85
        %p191 = pneg %p82
        %p192 = pneg %p111
        %p193 = pneg %p108
        %s194 = sand.u32 %s98, 1
        %s195 = scalar_lea.sflag [#allocation6], %s194
        %s196 = sand.u32 %s98, 1
        %s197 = smul.addr %s196, 416
        %s198 = scalar_lea.vmem [#allocation7], %s197
        %s199 = smul.u32 13, %s22
        %s200 = ssub.s32 25, %s199
        %p201 = scmp.lt.s32.totalorder %s200, 13
        %s202 = scalar_select %p201, %s200, 13
        %s203 = smul.u32 128, %s202
        %s204 = smul.u32 %s203, 4
        %s205 = smul.u32 13, %s22
        %s206 = ssub.s32 25, %s205
        %p207 = scmp.lt.s32.totalorder %s206, 13
        %s208 = scalar_select %p207, %s206, 13
        %s209 = smul.u32 128, %s208
        %s210 = smul.u32 %s209, 4
        %v211 = vld [vmem:[%s176] sm:$0xff]
        %v212 = vld [vmem:[%s176 + $0x8] sm:$0xff]
        %v213 = vld [vmem:[%s176 + $0x10] sm:$0xff]
        %v214 = vld [vmem:[%s176 + $0x18] sm:$0xff]
        %v215 = vld [vmem:[%s176 + $0x20] sm:$0xff]
        %v216 = vld [vmem:[%s176 + $0x28] sm:$0xff]
        %v217 = vld [vmem:[%s176 + $0x30] sm:$0xff]
        %v218 = vld [vmem:[%s176 + $0x38] sm:$0xff]
        %v219 = vld [vmem:[%s176 + $0x40] sm:$0xff]
        %v220 = vld [vmem:[%s176 + $0x48] sm:$0xff]
        %v221 = vld [vmem:[%s176 + $0x50] sm:$0xff]
        %v222 = vld [vmem:[%s176 + $0x58] sm:$0xff]
        %v223 = vld [vmem:[%s176 + $0x60] sm:$0xff]
        %v224 = vld [vmem:[%s176 + $0x68] sm:$0xff]
        %v225 = vld [vmem:[%s176 + $0x70] sm:$0xff]
        %v226 = vld [vmem:[%s176 + $0x78] sm:$0xff]
        %v227 = vld [vmem:[%s176 + $0x80] sm:$0xff]
        %v228 = vld [vmem:[%s176 + $0x88] sm:$0xff]
        %v229 = vld [vmem:[%s176 + $0x90] sm:$0xff]
        %v230 = vld [vmem:[%s176 + $0x98] sm:$0xff]
        %v231 = vld [vmem:[%s176 + $0xa0] sm:$0xff]
        %v232 = vld [vmem:[%s176 + $0xa8] sm:$0xff]
        %v233 = vld [vmem:[%s176 + $0xb0] sm:$0xff]
        %v234 = vld [vmem:[%s176 + $0xb8] sm:$0xff]
        %v235 = vld [vmem:[%s176 + $0xc0] sm:$0xff]
        %v236 = vld [vmem:[%s176 + $0xc8] sm:$0xff]
        %v237 = vld [vmem:[%s176 + $0xd0] sm:$0xff]
        %v238 = vld [vmem:[%s176 + $0xd8] sm:$0xff]
        %v239 = vld [vmem:[%s176 + $0xe0] sm:$0xff]
        %v240 = vld [vmem:[%s176 + $0xe8] sm:$0xff]
        %v241 = vld [vmem:[%s176 + $0xf0] sm:$0xff]
        %v242 = vld [vmem:[%s176 + $0xf8] sm:$0xff]
        %v243 = vld [vmem:[%s176 + $0x100] sm:$0xff]
        %v244 = vld [vmem:[%s176 + $0x108] sm:$0xff]
        %v245 = vld [vmem:[%s176 + $0x110] sm:$0xff]
        %v246 = vld [vmem:[%s176 + $0x118] sm:$0xff]
        %v247 = vld [vmem:[%s176 + $0x120] sm:$0xff]
        %v248 = vld [vmem:[%s176 + $0x128] sm:$0xff]
        %v249 = vld [vmem:[%s176 + $0x130] sm:$0xff]
        %v250 = vld [vmem:[%s176 + $0x138] sm:$0xff]
        %v251 = vld [vmem:[%s176 + $0x140] sm:$0xff]
        %v252 = vld [vmem:[%s176 + $0x148] sm:$0xff]
        %v253 = vld [vmem:[%s176 + $0x150] sm:$0xff]
        %v254 = vld [vmem:[%s176 + $0x158] sm:$0xff]
        %v255 = vld [vmem:[%s176 + $0x160] sm:$0xff]
        %v256 = vld [vmem:[%s176 + $0x168] sm:$0xff]
        %v257 = vld [vmem:[%s176 + $0x170] sm:$0xff]
        %v258 = vld [vmem:[%s176 + $0x178] sm:$0xff]
        %v259 = vld [vmem:[%s176 + $0x180] sm:$0xff]
        %v260 = vld [vmem:[%s176 + $0x188] sm:$0xff]
        %v261 = vld [vmem:[%s176 + $0x190] sm:$0xff]
        %v262 = vld [vmem:[%s176 + $0x198] sm:$0xff]
        %s263 = sld [smem:[#allocation2]]
        %v264 = vstv %s263
        %v265 = vmul.f32 %v211, %v264
        %v266 = vmul.f32 %v212, %v264
        %v267 = vmul.f32 %v213, %v264
        %v268 = vmul.f32 %v214, %v264
        %v269 = vmul.f32 %v215, %v264
        %v270 = vmul.f32 %v216, %v264
        %v271 = vmul.f32 %v217, %v264
        %v272 = vmul.f32 %v218, %v264
        %v273 = vmul.f32 %v219, %v264
        %v274 = vmul.f32 %v220, %v264
        %v275 = vmul.f32 %v221, %v264
        %v276 = vmul.f32 %v222, %v264
        %v277 = vmul.f32 %v223, %v264
        %v278 = vmul.f32 %v224, %v264
        %v279 = vmul.f32 %v225, %v264
        %v280 = vmul.f32 %v226, %v264
        %v281 = vmul.f32 %v227, %v264
        %v282 = vmul.f32 %v228, %v264
        %v283 = vmul.f32 %v229, %v264
        %v284 = vmul.f32 %v230, %v264
        %v285 = vmul.f32 %v231, %v264
        %v286 = vmul.f32 %v232, %v264
        %v287 = vmul.f32 %v233, %v264
        %v288 = vmul.f32 %v234, %v264
        %v289 = vmul.f32 %v235, %v264
        %v290 = vmul.f32 %v236, %v264
        %v291 = vmul.f32 %v237, %v264
        %v292 = vmul.f32 %v238, %v264
        %v293 = vmul.f32 %v239, %v264
        %v294 = vmul.f32 %v240, %v264
        %v295 = vmul.f32 %v241, %v264
        %v296 = vmul.f32 %v242, %v264
        %v297 = vmul.f32 %v243, %v264
        %v298 = vmul.f32 %v244, %v264
        %v299 = vmul.f32 %v245, %v264
        %v300 = vmul.f32 %v246, %v264
        %v301 = vmul.f32 %v247, %v264
        %v302 = vmul.f32 %v248, %v264
        %v303 = vmul.f32 %v249, %v264
        %v304 = vmul.f32 %v250, %v264
        %v305 = vmul.f32 %v251, %v264
        %v306 = vmul.f32 %v252, %v264
        %v307 = vmul.f32 %v253, %v264
        %v308 = vmul.f32 %v254, %v264
        %v309 = vmul.f32 %v255, %v264
        %v310 = vmul.f32 %v256, %v264
        %v311 = vmul.f32 %v257, %v264
        %v312 = vmul.f32 %v258, %v264
        %v313 = vmul.f32 %v259, %v264
        %v314 = vmul.f32 %v260, %v264
        %v315 = vmul.f32 %v261, %v264
        %v316 = vmul.f32 %v262, %v264
        %s317 = sld [smem:[#allocation3]]
        %v318 = vstv %s317
        %v319 = vadd.f32 %v265, %v318
        %v320 = vadd.f32 %v266, %v318
        %v321 = vadd.f32 %v267, %v318
        %v322 = vadd.f32 %v268, %v318
        %v323 = vadd.f32 %v269, %v318
        %v324 = vadd.f32 %v270, %v318
        %v325 = vadd.f32 %v271, %v318
        %v326 = vadd.f32 %v272, %v318
        %v327 = vadd.f32 %v273, %v318
        %v328 = vadd.f32 %v274, %v318
        %v329 = vadd.f32 %v275, %v318
        %v330 = vadd.f32 %v276, %v318
        %v331 = vadd.f32 %v277, %v318
        %v332 = vadd.f32 %v278, %v318
        %v333 = vadd.f32 %v279, %v318
        %v334 = vadd.f32 %v280, %v318
        %v335 = vadd.f32 %v281, %v318
        %v336 = vadd.f32 %v282, %v318
        %v337 = vadd.f32 %v283, %v318
        %v338 = vadd.f32 %v284, %v318
        %v339 = vadd.f32 %v285, %v318
        %v340 = vadd.f32 %v286, %v318
        %v341 = vadd.f32 %v287, %v318
        %v342 = vadd.f32 %v288, %v318
        %v343 = vadd.f32 %v289, %v318
        %v344 = vadd.f32 %v290, %v318
        %v345 = vadd.f32 %v291, %v318
        %v346 = vadd.f32 %v292, %v318
        %v347 = vadd.f32 %v293, %v318
        %v348 = vadd.f32 %v294, %v318
        %v349 = vadd.f32 %v295, %v318
        %v350 = vadd.f32 %v296, %v318
        %v351 = vadd.f32 %v297, %v318
        %v352 = vadd.f32 %v298, %v318
        %v353 = vadd.f32 %v299, %v318
        %v354 = vadd.f32 %v300, %v318
        %v355 = vadd.f32 %v301, %v318
        %v356 = vadd.f32 %v302, %v318
        %v357 = vadd.f32 %v303, %v318
        %v358 = vadd.f32 %v304, %v318
        %v359 = vadd.f32 %v305, %v318
        %v360 = vadd.f32 %v306, %v318
        %v361 = vadd.f32 %v307, %v318
        %v362 = vadd.f32 %v308, %v318
        %v363 = vadd.f32 %v309, %v318
        %v364 = vadd.f32 %v310, %v318
        %v365 = vadd.f32 %v311, %v318
        %v366 = vadd.f32 %v312, %v318
        %v367 = vadd.f32 %v313, %v318
        %v368 = vadd.f32 %v314, %v318
        %v369 = vadd.f32 %v315, %v318
        %v370 = vadd.f32 %v316, %v318
        %371 = vst [vmem:[%s198] sm:$0xff] %v319
        %372 = vst [vmem:[%s198 + $0x8] sm:$0xff] %v320
        %373 = vst [vmem:[%s198 + $0x10] sm:$0xff] %v321
        %374 = vst [vmem:[%s198 + $0x18] sm:$0xff] %v322
        %375 = vst [vmem:[%s198 + $0x20] sm:$0xff] %v323
        %376 = vst [vmem:[%s198 + $0x28] sm:$0xff] %v324
        %377 = vst [vmem:[%s198 + $0x30] sm:$0xff] %v325
        %378 = vst [vmem:[%s198 + $0x38] sm:$0xff] %v326
        %379 = vst [vmem:[%s198 + $0x40] sm:$0xff] %v327
        %380 = vst [vmem:[%s198 + $0x48] sm:$0xff] %v328
        %381 = vst [vmem:[%s198 + $0x50] sm:$0xff] %v329
        %382 = vst [vmem:[%s198 + $0x58] sm:$0xff] %v330
        %383 = vst [vmem:[%s198 + $0x60] sm:$0xff] %v331
        %384 = vst [vmem:[%s198 + $0x68] sm:$0xff] %v332
        %385 = vst [vmem:[%s198 + $0x70] sm:$0xff] %v333
        %386 = vst [vmem:[%s198 + $0x78] sm:$0xff] %v334
        %387 = vst [vmem:[%s198 + $0x80] sm:$0xff] %v335
        %388 = vst [vmem:[%s198 + $0x88] sm:$0xff] %v336
        %389 = vst [vmem:[%s198 + $0x90] sm:$0xff] %v337
        %390 = vst [vmem:[%s198 + $0x98] sm:$0xff] %v338
        %391 = vst [vmem:[%s198 + $0xa0] sm:$0xff] %v339
        %392 = vst [vmem:[%s198 + $0xa8] sm:$0xff] %v340
        %393 = vst [vmem:[%s198 + $0xb0] sm:$0xff] %v341
        %394 = vst [vmem:[%s198 + $0xb8] sm:$0xff] %v342
        %395 = vst [vmem:[%s198 + $0xc0] sm:$0xff] %v343
        %396 = vst [vmem:[%s198 + $0xc8] sm:$0xff] %v344
        %397 = vst [vmem:[%s198 + $0xd0] sm:$0xff] %v345
        %398 = vst [vmem:[%s198 + $0xd8] sm:$0xff] %v346
        %399 = vst [vmem:[%s198 + $0xe0] sm:$0xff] %v347
        %400 = vst [vmem:[%s198 + $0xe8] sm:$0xff] %v348
        %401 = vst [vmem:[%s198 + $0xf0] sm:$0xff] %v349
        %402 = vst [vmem:[%s198 + $0xf8] sm:$0xff] %v350
        %403 = vst [vmem:[%s198 + $0x100] sm:$0xff] %v351
        %404 = vst [vmem:[%s198 + $0x108] sm:$0xff] %v352
        %405 = vst [vmem:[%s198 + $0x110] sm:$0xff] %v353
        %406 = vst [vmem:[%s198 + $0x118] sm:$0xff] %v354
        %407 = vst [vmem:[%s198 + $0x120] sm:$0xff] %v355
        %408 = vst [vmem:[%s198 + $0x128] sm:$0xff] %v356
        %409 = vst [vmem:[%s198 + $0x130] sm:$0xff] %v357
        %410 = vst [vmem:[%s198 + $0x138] sm:$0xff] %v358
        %411 = vst [vmem:[%s198 + $0x140] sm:$0xff] %v359
        %412 = vst [vmem:[%s198 + $0x148] sm:$0xff] %v360
        %413 = vst [vmem:[%s198 + $0x150] sm:$0xff] %v361
        %414 = vst [vmem:[%s198 + $0x158] sm:$0xff] %v362
        %415 = vst [vmem:[%s198 + $0x160] sm:$0xff] %v363
        %416 = vst [vmem:[%s198 + $0x168] sm:$0xff] %v364
        %417 = vst [vmem:[%s198 + $0x170] sm:$0xff] %v365
        %418 = vst [vmem:[%s198 + $0x178] sm:$0xff] %v366
        %419 = vst [vmem:[%s198 + $0x180] sm:$0xff] %v367
        %420 = vst [vmem:[%s198 + $0x188] sm:$0xff] %v368
        %421 = vst [vmem:[%s198 + $0x190] sm:$0xff] %v369
        %422 = vst [vmem:[%s198 + $0x198] sm:$0xff] %v370
        %s423 = sand.u32 %s98, 1
        %s424 = scalar_lea.sflag [#allocation6], %s423
        %s425 = sand.u32 %s98, 1
        %s426 = smul.addr %s425, 416
        %s427 = scalar_lea.vmem [#allocation7], %s426
        // Predicated region
        $region37: #{tpu_custom_call.1} parent=31 // pred_check
          %p428 = pneg %p108
        $region38: #{tpu_custom_call.1} parent=31 // pred_check_branch
          %430 = sbr.rel (%p428) target = $region40
        $region39: #{tpu_custom_call.1} parent=31 // pred_region
          %s431 = smul.u32 13, %s22
          %s432 = ssub.s32 25, %s431
          %p433 = scmp.lt.s32.totalorder %s432, 13
          %s434 = scalar_select %p433, %s432, 13
          %s435 = smul.u32 128, %s434
          %s436 = smul.u32 %s435, 4
          %s438 = ssub.s32 6656, %s436
          %439 = vsyncadd %s424, %s438
          %p440 = scmp.ne.s32.totalorder 0, %s436
          %s441 = smul.addr %s431, 4
          %s442 = smul.addr %s441, 128
          %s443 = scalar_lea.hbm %s3, %s442
          %s444 = smul.u32 32, %s434
          %s445 = sshll.u32 %s427, 4
          %s446 = int_to_ptr.vmem [resolvable:$true] %s445
          %s447 = sshll.u32 %s444, 4
          %451 = dma.vmem_to_hbm [thread:$0]  (%p440), %s446, %s447, %s443, %s424, 512, 512, 32
        $region40: #{tpu_custom_call.1} parent=31 // pred_fallthru
          _
      $region32: #{tpu_custom_call.1} parent=5 // pred_fallthru
        _
      %p452 = scmp.le.s32.totalorder 2, %s17
      // Predicated region
      $region41: #{tpu_custom_call.1} parent=5 // pred_check
        %p453 = pneg %p452
      $region42: #{tpu_custom_call.1} parent=5 // pred_check_branch
        %455 = sbr.rel (%p453) target = $region44
      $region43: #{tpu_custom_call.1} parent=5 // pred_region
        %s456 = ssub.s32 %s17, 2
        // Predicated region
        $region45: #{tpu_custom_call.1} parent=43 // pred_check
          %p457 = pneg %p114
        $region46: #{tpu_custom_call.1} parent=43 // pred_check_branch
          %459 = sbr.rel (%p457) target = $region48
        $region47: #{tpu_custom_call.1} parent=43 // pred_region
          %s460 = sand.u32 %s99, 1
          %s461 = scalar_lea.sflag [#allocation6], %s460
          %s462 = sand.u32 %s99, 1
          %s463 = smul.addr %s462, 416
          %s464 = scalar_lea.vmem [#allocation7], %s463
          %465 = dma.done %s461, 6656
        $region48: #{tpu_custom_call.1} parent=43 // pred_fallthru
          _
      $region44: #{tpu_custom_call.1} parent=5 // pred_fallthru
        _
    $region6: #{tpu_custom_call.1} parent=1 // loop_footer
      %s21 = sadd.s32 1, %s17
    $region7: #{tpu_custom_call.1} parent=1 // loop_footer_branch
      %16 = sbr.rel target = $region3
    $region8: #{tpu_custom_call.1} parent=1 // loop_exit
      _
    %466 = vsyncpa [#allocation5], 1
    %s467 = scalar_lea.sflag [#allocation5], 1
    %468 = vsyncpa %s467, 1
    %469 = vsyncpa [#allocation6], 1
    %s470 = scalar_lea.sflag [#allocation6], 1
    %471 = vsyncpa %s470, 1

</llo_original>
